<compile_context>
chip_gen: v5e
topology: v5e:2x2
jax: 0.10.0
libtpu: 0.0.40
codegen_flags: <defaults>
</compile_context>

<pallas_src>
import functools

import jax
import jax.numpy as jnp
from jax.experimental import pallas as pl
from jax.experimental.pallas import tpu as pltpu


def _leaky_relu(x, slope=0.1):
    return jnp.where(x > 0, x, slope * x)


def discriminator_kernel(x_ref,
                         w1_ref, b1_ref,
                         w2_ref, b2_ref,
                         w3_ref, b3_ref,
                         w4_ref, b4_ref,
                         o_ref):
    # Layer 1-3: bf16 MXU inputs (full-rate on v5e/v6e/v7x), f32 accumulation,
    # bias + LeakyReLU in f32 on the VPU. Weight refs arrive already in bf16.
    h = jnp.dot(x_ref[...].astype(jnp.bfloat16), w1_ref[...],
                preferred_element_type=jnp.float32) + b1_ref[...]
    h = _leaky_relu(h)

    h = jnp.dot(h.astype(jnp.bfloat16), w2_ref[...],
                preferred_element_type=jnp.float32) + b2_ref[...]
    h = _leaky_relu(h)

    h = jnp.dot(h.astype(jnp.bfloat16), w3_ref[...],
                preferred_element_type=jnp.float32) + b3_ref[...]
    h = _leaky_relu(h)

    # Final Linear(128, 1): an N=1 matmul wastes the whole MXU result path, so
    # do it as a VPU multiply against the (1,128) weight row + XLU lane-reduce.
    out = jnp.sum(h * w4_ref[...], axis=-1, keepdims=True) + b4_ref[...]
    o_ref[...] = out.astype(o_ref.dtype)


def discriminator_forward(x, params, *, tm=512):
    """x: (B, label_dim + feature_dim) float32. Returns (B, 1) float32."""
    (w1, b1), (w2, b2), (w3, b3), (w4, b4) = params
    B, d_in = x.shape
    x = x.astype(jnp.float32)

    # One-time (outside-kernel) weight prep: bf16 MXU weights, last-layer
    # weight as a (1, 128) f32 row for the in-kernel reduction.
    w1b = w1.astype(jnp.bfloat16)
    w2b = w2.astype(jnp.bfloat16)
    w3b = w3.astype(jnp.bfloat16)
    w4_row = w4.reshape(1, w4.shape[0]).astype(jnp.float32)
    b4_2d = b4.reshape(1, 1).astype(jnp.float32)

    # Batch tile: sublane-aligned when tiling, otherwise one full-batch block.
    if B > tm:
        tm = max(8, (tm // 8) * 8)
    else:
        tm = B
    grid = pl.cdiv(B, tm)
    b_pad = grid * tm
    if b_pad != B:
        x = jnp.pad(x, ((0, b_pad - B), (0, 0)))

    h1, h2, h3 = w1.shape[1], w2.shape[1], w3.shape[1]   # 256, 256, 128

    flops = 2 * b_pad * (d_in * h1 + h1 * h2 + h2 * h3 + h3)
    param_bytes = (w1b.size * 2 + w2b.size * 2 + w3b.size * 2
                   + (b1.size + b2.size + b3.size + w4_row.size + 1) * 4)
    bytes_accessed = b_pad * d_in * 4 + b_pad * 4 + param_bytes

    const = lambda i: (0, 0)   # weights/biases: resident, DMA'd once

    out = pl.pallas_call(
        discriminator_kernel,
        out_shape=jax.ShapeDtypeStruct((b_pad, 1), jnp.float32),
        grid=(grid,),
        in_specs=[
            pl.BlockSpec((tm, d_in), lambda i: (i, 0)),   # x: batch-tiled
            pl.BlockSpec((d_in, h1), const),              # w1 (bf16)
            pl.BlockSpec((1, h1), const),                 # b1
            pl.BlockSpec((h1, h2), const),                # w2 (bf16)
            pl.BlockSpec((1, h2), const),                 # b2
            pl.BlockSpec((h2, h3), const),                # w3 (bf16)
            pl.BlockSpec((1, h3), const),                 # b3
            pl.BlockSpec((1, h3), const),                 # w4 as a row
            pl.BlockSpec((1, 1), const),                  # b4 scalar
        ],
        out_specs=pl.BlockSpec((tm, 1), lambda i: (i, 0)),
        compiler_params=pltpu.CompilerParams(
            dimension_semantics=("parallel",)),
        cost_estimate=pl.CostEstimate(
            flops=flops, transcendentals=0, bytes_accessed=bytes_accessed),
    )(x, w1b, b1, w2b, b2, w3b, b3, w4_row, b4_2d)

    return out[:B]


def init_params(key, label_dim, feature_dim):
    """PyTorch-style uniform(+/- 1/sqrt(fan_in)) init.

    Weights are stored already transposed to (in_features, out_features);
    biases are (1, out_features)."""
    dims = [(label_dim + feature_dim, 256), (256, 256), (256, 128), (128, 1)]
    params = []
    for (fan_in, fan_out) in dims:
        key, kw, kb = jax.random.split(key, 3)
        bound = 1.0 / jnp.sqrt(float(fan_in))
        w = jax.random.uniform(kw, (fan_in, fan_out), jnp.float32, -bound, bound)
        b = jax.random.uniform(kb, (1, fan_out), jnp.float32, -bound, bound)
        params.append((w, b))
    return params


def reference_forward_mixed(x, params):
    """Mirrors the kernel's math exactly (bf16 MXU inputs, f32 accumulation)."""
    (w1, b1), (w2, b2), (w3, b3), (w4, b4) = params
    h = x.astype(jnp.float32)
    for w, b in ((w1, b1), (w2, b2), (w3, b3)):
        h = jnp.dot(h.astype(jnp.bfloat16), w.astype(jnp.bfloat16),
                    preferred_element_type=jnp.float32) + b
        h = jnp.where(h > 0, h, 0.1 * h)
    return jnp.sum(h * w4.reshape(1, -1), axis=-1, keepdims=True) + b4.reshape(1, 1)


def reference_forward_f32(x, params):
    """Pure f32 PyTorch semantics."""
    h = x
    for i, (w, b) in enumerate(params):
        h = h @ w + b
        if i < len(params) - 1:
            h = jnp.where(h > 0, h, 0.1 * h)
    return h


if __name__ == "__main__":
    label_dim = 8
    feature_dim = 24
    batch = 40        # not a multiple of the tile -> exercises the padding path
    tile_m = 16       # small tile so the demo runs a multi-step batch grid

    key = jax.random.PRNGKey(0)
    key, k_in = jax.random.split(key)

    x = jax.random.normal(k_in, (batch, label_dim + feature_dim), jnp.float32)
    params = init_params(key, label_dim, feature_dim)

    out = discriminator_forward(x, params, tm=tile_m)
    out = jax.block_until_ready(out)

    assert out.shape == (batch, 1), out.shape

    ref_mixed = reference_forward_mixed(x, params)
    ref_f32 = reference_forward_f32(x, params)
    assert jnp.allclose(out, ref_mixed, atol=1e-3, rtol=1e-3), \
        "mismatch vs mixed-precision reference"
    assert jnp.allclose(out, ref_f32, atol=5e-2, rtol=5e-2), \
        "mismatch vs f32 reference (bf16 matmul tolerance)"

    print("KERNEL_OK")
</pallas_src>

<mosaic_0001>
module attributes {stable_mosaic.version = 11 : i64} {
  func.func @discriminator_kernel(%arg0: i32, %arg1: memref<16x32xf32, #tpu.memory_space<vmem>>, %arg2: memref<32x256xbf16, #tpu.memory_space<vmem>>, %arg3: memref<1x256xf32, #tpu.memory_space<vmem>>, %arg4: memref<256x256xbf16, #tpu.memory_space<vmem>>, %arg5: memref<1x256xf32, #tpu.memory_space<vmem>>, %arg6: memref<256x128xbf16, #tpu.memory_space<vmem>>, %arg7: memref<1x128xf32, #tpu.memory_space<vmem>>, %arg8: memref<1x128xf32, #tpu.memory_space<vmem>>, %arg9: memref<1x1xf32, #tpu.memory_space<vmem>>, %arg10: memref<16x1xf32, #tpu.memory_space<vmem>>) attributes {dimension_semantics = [#tpu.dimension_semantics<parallel>], iteration_bounds = array<i64: 3>, scalar_prefetch = 0 : i64, scratch_operands = 0 : i64, tpu.core_type = #tpu.core_type<tc>, window_params = [{transform_indices = @transform_0, window_bounds = array<i64: 16, 32>}, {pipeline_mode = #tpu.pipeline_mode<synchronous>, transform_indices = @transform_1, window_bounds = array<i64: 32, 256>}, {pipeline_mode = #tpu.pipeline_mode<synchronous>, transform_indices = @transform_2, window_bounds = array<i64: 1, 256>}, {pipeline_mode = #tpu.pipeline_mode<synchronous>, transform_indices = @transform_3, window_bounds = array<i64: 256, 256>}, {pipeline_mode = #tpu.pipeline_mode<synchronous>, transform_indices = @transform_4, window_bounds = array<i64: 1, 256>}, {pipeline_mode = #tpu.pipeline_mode<synchronous>, transform_indices = @transform_5, window_bounds = array<i64: 256, 128>}, {pipeline_mode = #tpu.pipeline_mode<synchronous>, transform_indices = @transform_6, window_bounds = array<i64: 1, 128>}, {pipeline_mode = #tpu.pipeline_mode<synchronous>, transform_indices = @transform_7, window_bounds = array<i64: 1, 128>}, {pipeline_mode = #tpu.pipeline_mode<synchronous>, transform_indices = @transform_8, window_bounds = array<i64: 1, 1>}, {transform_indices = @transform_9, window_bounds = array<i64: 16, 1>}]} {
    %c0 = arith.constant 0 : index
    %c0_0 = arith.constant 0 : index
    %0 = vector.load %arg1[%c0, %c0_0] : memref<16x32xf32, #tpu.memory_space<vmem>>, vector<16x32xf32>
    %1 = arith.truncf %0 : vector<16x32xf32> to vector<16x32xbf16>
    %c0_1 = arith.constant 0 : index
    %c0_2 = arith.constant 0 : index
    %2 = vector.load %arg2[%c0_1, %c0_2] : memref<32x256xbf16, #tpu.memory_space<vmem>>, vector<32x256xbf16>
    %cst = arith.constant dense<0.000000e+00> : vector<16x256xf32>
    %3 = tpu.matmul %1, %2, %cst {dimension_numbers = #tpu.dot_dimension_numbers<[1], [0], [0], [1], [0, 0, 1, 1], [], []>} : vector<16x32xbf16>, vector<32x256xbf16>, vector<16x256xf32> -> vector<16x256xf32>
    %c0_3 = arith.constant 0 : index
    %c0_4 = arith.constant 0 : index
    %4 = vector.load %arg3[%c0_3, %c0_4] : memref<1x256xf32, #tpu.memory_space<vmem>>, vector<1x256xf32>
    %5 = vector.broadcast %4 : vector<1x256xf32> to vector<16x256xf32>
    %6 = arith.addf %3, %5 : vector<16x256xf32>
    %cst_5 = arith.constant 0.000000e+00 : f32
    %7 = vector.broadcast %cst_5 : f32 to vector<16x256xf32>
    %8 = arith.cmpf ogt, %6, %7 : vector<16x256xf32>
    %cst_6 = arith.constant 1.000000e-01 : f32
    %9 = vector.broadcast %cst_6 : f32 to vector<16x256xf32>
    %10 = arith.mulf %9, %6 : vector<16x256xf32>
    %11 = arith.select %8, %6, %10 : vector<16x256xi1>, vector<16x256xf32>
    %12 = arith.truncf %11 : vector<16x256xf32> to vector<16x256xbf16>
    %c0_7 = arith.constant 0 : index
    %c0_8 = arith.constant 0 : index
    %13 = vector.load %arg4[%c0_7, %c0_8] : memref<256x256xbf16, #tpu.memory_space<vmem>>, vector<256x256xbf16>
    %cst_9 = arith.constant dense<0.000000e+00> : vector<16x256xf32>
    %14 = tpu.matmul %12, %13, %cst_9 {dimension_numbers = #tpu.dot_dimension_numbers<[1], [0], [0], [1], [0, 0, 1, 1], [], []>} : vector<16x256xbf16>, vector<256x256xbf16>, vector<16x256xf32> -> vector<16x256xf32>
    %c0_10 = arith.constant 0 : index
    %c0_11 = arith.constant 0 : index
    %15 = vector.load %arg5[%c0_10, %c0_11] : memref<1x256xf32, #tpu.memory_space<vmem>>, vector<1x256xf32>
    %16 = vector.broadcast %15 : vector<1x256xf32> to vector<16x256xf32>
    %17 = arith.addf %14, %16 : vector<16x256xf32>
    %cst_12 = arith.constant 0.000000e+00 : f32
    %18 = vector.broadcast %cst_12 : f32 to vector<16x256xf32>
    %19 = arith.cmpf ogt, %17, %18 : vector<16x256xf32>
    %cst_13 = arith.constant 1.000000e-01 : f32
    %20 = vector.broadcast %cst_13 : f32 to vector<16x256xf32>
    %21 = arith.mulf %20, %17 : vector<16x256xf32>
    %22 = arith.select %19, %17, %21 : vector<16x256xi1>, vector<16x256xf32>
    %23 = arith.truncf %22 : vector<16x256xf32> to vector<16x256xbf16>
    %c0_14 = arith.constant 0 : index
    %c0_15 = arith.constant 0 : index
    %24 = vector.load %arg6[%c0_14, %c0_15] : memref<256x128xbf16, #tpu.memory_space<vmem>>, vector<256x128xbf16>
    %cst_16 = arith.constant dense<0.000000e+00> : vector<16x128xf32>
    %25 = tpu.matmul %23, %24, %cst_16 {dimension_numbers = #tpu.dot_dimension_numbers<[1], [0], [0], [1], [0, 0, 1, 1], [], []>} : vector<16x256xbf16>, vector<256x128xbf16>, vector<16x128xf32> -> vector<16x128xf32>
    %c0_17 = arith.constant 0 : index
    %c0_18 = arith.constant 0 : index
    %26 = vector.load %arg7[%c0_17, %c0_18] : memref<1x128xf32, #tpu.memory_space<vmem>>, vector<1x128xf32>
    %27 = vector.broadcast %26 : vector<1x128xf32> to vector<16x128xf32>
    %28 = arith.addf %25, %27 : vector<16x128xf32>
    %cst_19 = arith.constant 0.000000e+00 : f32
    %29 = vector.broadcast %cst_19 : f32 to vector<16x128xf32>
    %30 = arith.cmpf ogt, %28, %29 : vector<16x128xf32>
    %cst_20 = arith.constant 1.000000e-01 : f32
    %31 = vector.broadcast %cst_20 : f32 to vector<16x128xf32>
    %32 = arith.mulf %31, %28 : vector<16x128xf32>
    %33 = arith.select %30, %28, %32 : vector<16x128xi1>, vector<16x128xf32>
    %c0_21 = arith.constant 0 : index
    %c0_22 = arith.constant 0 : index
    %34 = vector.load %arg8[%c0_21, %c0_22] : memref<1x128xf32, #tpu.memory_space<vmem>>, vector<1x128xf32>
    %35 = vector.broadcast %34 : vector<1x128xf32> to vector<16x128xf32>
    %36 = arith.mulf %33, %35 : vector<16x128xf32>
    %cst_23 = arith.constant dense<0.000000e+00> : vector<16xf32>
    %37 = vector.multi_reduction <add>, %36, %cst_23 [1] : vector<16x128xf32> to vector<16xf32>
    %38 = vector.shape_cast %37 : vector<16xf32> to vector<16x1xf32>
    %c0_24 = arith.constant 0 : index
    %c0_25 = arith.constant 0 : index
    %39 = vector.load %arg9[%c0_24, %c0_25] : memref<1x1xf32, #tpu.memory_space<vmem>>, vector<1x1xf32>
    %40 = vector.broadcast %39 : vector<1x1xf32> to vector<16x1xf32>
    %41 = arith.addf %38, %40 : vector<16x1xf32>
    %c0_26 = arith.constant 0 : index
    %c0_27 = arith.constant 0 : index
    %42 = vector.load %arg10[%c0_26, %c0_27] : memref<16x1xf32, #tpu.memory_space<vmem>>, vector<16x1xf32>
    tpu.vector_store %arg10[%c0_26, %c0_27], %41 {strides = array<i32>} : memref<16x1xf32, #tpu.memory_space<vmem>>, vector<16x1xf32>,
    return
  }
  func.func @transform_0(%arg0: i32) -> (i32, i32) {
    %c0_i32 = arith.constant 0 : i32
    %c0_i32_0 = arith.constant 0 : i32
    return %arg0, %c0_i32 : i32, i32
  }
  func.func @transform_1(%arg0: i32) -> (i32, i32) {
    %c0_i32 = arith.constant 0 : i32
    %c0_i32_0 = arith.constant 0 : i32
    %c0_i32_1 = arith.constant 0 : i32
    return %c0_i32, %c0_i32_0 : i32, i32
  }
  func.func @transform_2(%arg0: i32) -> (i32, i32) {
    %c0_i32 = arith.constant 0 : i32
    %c0_i32_0 = arith.constant 0 : i32
    %c0_i32_1 = arith.constant 0 : i32
    return %c0_i32, %c0_i32_0 : i32, i32
  }
  func.func @transform_3(%arg0: i32) -> (i32, i32) {
    %c0_i32 = arith.constant 0 : i32
    %c0_i32_0 = arith.constant 0 : i32
    %c0_i32_1 = arith.constant 0 : i32
    return %c0_i32, %c0_i32_0 : i32, i32
  }
  func.func @transform_4(%arg0: i32) -> (i32, i32) {
    %c0_i32 = arith.constant 0 : i32
    %c0_i32_0 = arith.constant 0 : i32
    %c0_i32_1 = arith.constant 0 : i32
    return %c0_i32, %c0_i32_0 : i32, i32
  }
  func.func @transform_5(%arg0: i32) -> (i32, i32) {
    %c0_i32 = arith.constant 0 : i32
    %c0_i32_0 = arith.constant 0 : i32
    %c0_i32_1 = arith.constant 0 : i32
    return %c0_i32, %c0_i32_0 : i32, i32
  }
  func.func @transform_6(%arg0: i32) -> (i32, i32) {
    %c0_i32 = arith.constant 0 : i32
    %c0_i32_0 = arith.constant 0 : i32
    %c0_i32_1 = arith.constant 0 : i32
    return %c0_i32, %c0_i32_0 : i32, i32
  }
  func.func @transform_7(%arg0: i32) -> (i32, i32) {
    %c0_i32 = arith.constant 0 : i32
    %c0_i32_0 = arith.constant 0 : i32
    %c0_i32_1 = arith.constant 0 : i32
    return %c0_i32, %c0_i32_0 : i32, i32
  }
  func.func @transform_8(%arg0: i32) -> (i32, i32) {
    %c0_i32 = arith.constant 0 : i32
    %c0_i32_0 = arith.constant 0 : i32
    %c0_i32_1 = arith.constant 0 : i32
    return %c0_i32, %c0_i32_0 : i32, i32
  }
  func.func @transform_9(%arg0: i32) -> (i32, i32) {
    %c0_i32 = arith.constant 0 : i32
    %c0_i32_0 = arith.constant 0 : i32
    return %arg0, %c0_i32 : i32, i32
  }
}

</mosaic_0001>

<llo_original>
// kernel: tpu_custom_call.1
$region0: #{tpu_custom_call.1}
  #allocation0 [shape = 'u32[]', space=smem, size = 0x4, offset = 0x4, fixed_abs, tag = 'smem constant byte address 0x4 - core index']
  #allocation1 [shape = 'u32[72,128]{1,0:T(1,128)}', space=vmem, size = 0x9000, scoped, tag = 'internal scratch']
  #allocation2 [shape = 'f32[1,1]{1,0:T(1,128)S(1)}', space=vmem, size = 0x200, scoped, tag = 'scoped memory for tpu_custom_call.1']
  %s0 = inlined_call_operand.vmem [shape: f32[48,32], index: 0, kind: input, shape index: {}]
  %s1 = inlined_call_operand.vmem [shape: bf16[32,256], index: 1, kind: input, shape index: {}]
  %s2 = inlined_call_operand.vmem [shape: f32[1,256], index: 2, kind: input, shape index: {}]
  %s3 = inlined_call_operand.hbm [shape: bf16[256,256], index: 3, kind: input, shape index: {}]
  %s4 = inlined_call_operand.vmem [shape: f32[1,256], index: 4, kind: input, shape index: {}]
  %s5 = inlined_call_operand.hbm [shape: bf16[256,128], index: 5, kind: input, shape index: {}]
  %s6 = inlined_call_operand.vmem [shape: f32[1,128], index: 6, kind: input, shape index: {}]
  %s7 = inlined_call_operand.vmem [shape: f32[1,128], index: 7, kind: input, shape index: {}]
  %s8 = inlined_call_operand.<no memory space> [shape: f32[1,1], index: 8, kind: input, shape index: {}]
  %s9 = inlined_call_operand.vmem [shape: f32[48,1], index: 9, kind: output, shape index: {}]
  %s10 = sld [smem:[#allocation0]]
  $region77: #{tpu_custom_call.1} parent=0
    _
  %s12 = ssub.s32 1, %s10
  %s13 = scalar_select 0, %s12, %s10
  %v14 = vstv %s8
  %15 = vst [vmem:[#allocation2] sm:$0x1] %v14
  $region1: #{tpu_custom_call.1} parent=0
    #allocation3 [shape = 'u8[131072]{0}', space=vmem, size = 0x20000, scoped, tag = 'input window, operand 3, single buffered']
    #allocation4 [shape = 's32[2]{0}', space=sflag, size = 0x8, scoped, tag = 'scoped memory for tpu_custom_call.1']
    #allocation5 [shape = 'u8[65536]{0}', space=vmem, size = 0x10000, scoped, tag = 'input window, operand 5, single buffered']
    #allocation6 [shape = 's32[1]{0}', space=sflag, size = 0x4, scoped, tag = 'scoped memory for tpu_custom_call.1']
    %16 = vsyncpa [#allocation4], 0
    %17 = vsyncpa [#allocation6], 0
    loop: start=0, step=1, limit=5
    $region2: #{tpu_custom_call.1} parent=1 // loop_pre_header
      _
    $region3: #{tpu_custom_call.1} parent=1 // loop_header
      %s19 = sphi 0, %s23
      %p20 = scmp.ge.s32.totalorder %s19, 5
      %s29 = sphi 0, %s31
      %s32 = sphi 0, %s29
      %s33 = sphi 0, %s32
      %s49 = sphi 0, %s33
      %s53 = sphi 0, %s53
      %s55 = sphi 0, %s53
      %s56 = sphi 0, %s55
      %s70 = sphi 0, %s56
      %s74 = sphi 0, %s74
      %s76 = sphi 0, %s74
      %s77 = sphi 0, %s76
      %s91 = sphi 0, %s77
      %s95 = sphi 0, %s95
      %s97 = sphi 0, %s95
      %s98 = sphi 0, %s97
      %s112 = sphi 0, %s98
      %s116 = sphi 0, %s116
      %s118 = sphi 0, %s116
      %s119 = sphi 0, %s118
      %s133 = sphi 0, %s119
      %s137 = sphi 0, %s137
      %s139 = sphi 0, %s137
      %s140 = sphi 0, %s139
      %s154 = sphi 0, %s140
      %s158 = sphi 0, %s158
      %s160 = sphi 0, %s158
      %s161 = sphi 0, %s160
      %s175 = sphi 0, %s161
      %s179 = sphi 0, %s179
      %s181 = sphi 0, %s179
      %s182 = sphi 0, %s181
      %s196 = sphi 0, %s182
      %s200 = sphi 0, %s200
      %s202 = sphi 0, %s200
      %s203 = sphi 0, %s202
      %s217 = sphi 0, %s203
      %s223 = sphi 0, %s225
      %s226 = sphi 0, %s223
      %s227 = sphi 0, %s226
      %s243 = sphi 0, %s227
    $region4: #{tpu_custom_call.1} parent=1 // loop_header_branch
      %22 = sbr.rel (%p20) target = $region8
    $region5: #{tpu_custom_call.1} parent=1 // loop_body
      %s24 = ssub.s32 %s19, 1
      %s25 = ssub.s32 %s19, 2
      %s26 = sadd.s32 %s19, 1
      %s27 = ssub.s32 %s19, %s26
      %p28 = scmp.eq.s32.totalorder %s27, 0
      %s30 = sadd.s32 %s29, 1
      %s31 = scalar_select %p28, %s29, %s30
      %p34 = pneg %p28
      %p35 = scmp.eq.s32.totalorder %s19, 2
      %p36 = por %p34, %p35
      %p37 = scmp.ne.s32.totalorder %s29, %s32
      %p38 = scmp.eq.s32.totalorder %s19, 0
      %p39 = por %p37, %p38
      %p40 = scmp.ne.s32.totalorder %s29, %s32
      %p41 = scmp.eq.s32.totalorder %s24, 2
      %p42 = por %p40, %p41
      %p43 = scmp.ne.s32.totalorder %s32, %s33
      %p44 = scmp.eq.s32.totalorder %s24, 0
      %p45 = por %p43, %p44
      %p46 = scmp.ne.s32.totalorder %s32, %s33
      %p47 = scmp.eq.s32.totalorder %s25, 2
      %p48 = por %p46, %p47
      %p50 = scmp.ne.s32.totalorder %s33, %s49
      %p51 = scmp.eq.s32.totalorder %s25, 0
      %p52 = por %p50, %p51
      %s54 = sadd.s32 %s53, 1
      %p57 = scmp.eq.s32.totalorder %s19, 2
      %p58 = scmp.ne.s32.totalorder %s53, %s55
      %p59 = scmp.eq.s32.totalorder %s19, 0
      %p60 = por %p58, %p59
      %p61 = scmp.ne.s32.totalorder %s53, %s55
      %p62 = scmp.eq.s32.totalorder %s24, 2
      %p63 = por %p61, %p62
      %p64 = scmp.ne.s32.totalorder %s55, %s56
      %p65 = scmp.eq.s32.totalorder %s24, 0
      %p66 = por %p64, %p65
      %p67 = scmp.ne.s32.totalorder %s55, %s56
      %p68 = scmp.eq.s32.totalorder %s25, 2
      %p69 = por %p67, %p68
      %p71 = scmp.ne.s32.totalorder %s56, %s70
      %p72 = scmp.eq.s32.totalorder %s25, 0
      %p73 = por %p71, %p72
      %s75 = sadd.s32 %s74, 1
      %p78 = scmp.eq.s32.totalorder %s19, 2
      %p79 = scmp.ne.s32.totalorder %s74, %s76
      %p80 = scmp.eq.s32.totalorder %s19, 0
      %p81 = por %p79, %p80
      %p82 = scmp.ne.s32.totalorder %s74, %s76
      %p83 = scmp.eq.s32.totalorder %s24, 2
      %p84 = por %p82, %p83
      %p85 = scmp.ne.s32.totalorder %s76, %s77
      %p86 = scmp.eq.s32.totalorder %s24, 0
      %p87 = por %p85, %p86
      %p88 = scmp.ne.s32.totalorder %s76, %s77
      %p89 = scmp.eq.s32.totalorder %s25, 2
      %p90 = por %p88, %p89
      %p92 = scmp.ne.s32.totalorder %s77, %s91
      %p93 = scmp.eq.s32.totalorder %s25, 0
      %p94 = por %p92, %p93
      %s96 = sadd.s32 %s95, 1
      %p99 = scmp.eq.s32.totalorder %s19, 2
      %p100 = scmp.ne.s32.totalorder %s95, %s97
      %p101 = scmp.eq.s32.totalorder %s19, 0
      %p102 = por %p100, %p101
      %p103 = scmp.ne.s32.totalorder %s95, %s97
      %p104 = scmp.eq.s32.totalorder %s24, 2
      %p105 = por %p103, %p104
      %p106 = scmp.ne.s32.totalorder %s97, %s98
      %p107 = scmp.eq.s32.totalorder %s24, 0
      %p108 = por %p106, %p107
      %p109 = scmp.ne.s32.totalorder %s97, %s98
      %p110 = scmp.eq.s32.totalorder %s25, 2
      %p111 = por %p109, %p110
      %p113 = scmp.ne.s32.totalorder %s98, %s112
      %p114 = scmp.eq.s32.totalorder %s25, 0
      %p115 = por %p113, %p114
      %s117 = sadd.s32 %s116, 1
      %p120 = scmp.eq.s32.totalorder %s19, 2
      %p121 = scmp.ne.s32.totalorder %s116, %s118
      %p122 = scmp.eq.s32.totalorder %s19, 0
      %p123 = por %p121, %p122
      %p124 = scmp.ne.s32.totalorder %s116, %s118
      %p125 = scmp.eq.s32.totalorder %s24, 2
      %p126 = por %p124, %p125
      %p127 = scmp.ne.s32.totalorder %s118, %s119
      %p128 = scmp.eq.s32.totalorder %s24, 0
      %p129 = por %p127, %p128
      %p130 = scmp.ne.s32.totalorder %s118, %s119
      %p131 = scmp.eq.s32.totalorder %s25, 2
      %p132 = por %p130, %p131
      %p134 = scmp.ne.s32.totalorder %s119, %s133
      %p135 = scmp.eq.s32.totalorder %s25, 0
      %p136 = por %p134, %p135
      %s138 = sadd.s32 %s137, 1
      %p141 = scmp.eq.s32.totalorder %s19, 2
      %p142 = scmp.ne.s32.totalorder %s137, %s139
      %p143 = scmp.eq.s32.totalorder %s19, 0
      %p144 = por %p142, %p143
      %p145 = scmp.ne.s32.totalorder %s137, %s139
      %p146 = scmp.eq.s32.totalorder %s24, 2
      %p147 = por %p145, %p146
      %p148 = scmp.ne.s32.totalorder %s139, %s140
      %p149 = scmp.eq.s32.totalorder %s24, 0
      %p150 = por %p148, %p149
      %p151 = scmp.ne.s32.totalorder %s139, %s140
      %p152 = scmp.eq.s32.totalorder %s25, 2
      %p153 = por %p151, %p152
      %p155 = scmp.ne.s32.totalorder %s140, %s154
      %p156 = scmp.eq.s32.totalorder %s25, 0
      %p157 = por %p155, %p156
      %s159 = sadd.s32 %s158, 1
      %p162 = scmp.eq.s32.totalorder %s19, 2
      %p163 = scmp.ne.s32.totalorder %s158, %s160
      %p164 = scmp.eq.s32.totalorder %s19, 0
      %p165 = por %p163, %p164
      %p166 = scmp.ne.s32.totalorder %s158, %s160
      %p167 = scmp.eq.s32.totalorder %s24, 2
      %p168 = por %p166, %p167
      %p169 = scmp.ne.s32.totalorder %s160, %s161
      %p170 = scmp.eq.s32.totalorder %s24, 0
      %p171 = por %p169, %p170
      %p172 = scmp.ne.s32.totalorder %s160, %s161
      %p173 = scmp.eq.s32.totalorder %s25, 2
      %p174 = por %p172, %p173
      %p176 = scmp.ne.s32.totalorder %s161, %s175
      %p177 = scmp.eq.s32.totalorder %s25, 0
      %p178 = por %p176, %p177
      %s180 = sadd.s32 %s179, 1
      %p183 = scmp.eq.s32.totalorder %s19, 2
      %p184 = scmp.ne.s32.totalorder %s179, %s181
      %p185 = scmp.eq.s32.totalorder %s19, 0
      %p186 = por %p184, %p185
      %p187 = scmp.ne.s32.totalorder %s179, %s181
      %p188 = scmp.eq.s32.totalorder %s24, 2
      %p189 = por %p187, %p188
      %p190 = scmp.ne.s32.totalorder %s181, %s182
      %p191 = scmp.eq.s32.totalorder %s24, 0
      %p192 = por %p190, %p191
      %p193 = scmp.ne.s32.totalorder %s181, %s182
      %p194 = scmp.eq.s32.totalorder %s25, 2
      %p195 = por %p193, %p194
      %p197 = scmp.ne.s32.totalorder %s182, %s196
      %p198 = scmp.eq.s32.totalorder %s25, 0
      %p199 = por %p197, %p198
      %s201 = sadd.s32 %s200, 1
      %p204 = scmp.eq.s32.totalorder %s19, 2
      %p205 = scmp.ne.s32.totalorder %s200, %s202
      %p206 = scmp.eq.s32.totalorder %s19, 0
      %p207 = por %p205, %p206
      %p208 = scmp.ne.s32.totalorder %s200, %s202
      %p209 = scmp.eq.s32.totalorder %s24, 2
      %p210 = por %p208, %p209
      %p211 = scmp.ne.s32.totalorder %s202, %s203
      %p212 = scmp.eq.s32.totalorder %s24, 0
      %p213 = por %p211, %p212
      %p214 = scmp.ne.s32.totalorder %s202, %s203
      %p215 = scmp.eq.s32.totalorder %s25, 2
      %p216 = por %p214, %p215
      %p218 = scmp.ne.s32.totalorder %s203, %s217
      %p219 = scmp.eq.s32.totalorder %s25, 0
      %p220 = por %p218, %p219
      %s221 = ssub.s32 %s19, %s26
      %p222 = scmp.eq.s32.totalorder %s221, 0
      %s224 = sadd.s32 %s223, 1
      %s225 = scalar_select %p222, %s223, %s224
      %p228 = pneg %p222
      %p229 = scmp.eq.s32.totalorder %s19, 2
      %p230 = por %p228, %p229
      %p231 = scmp.ne.s32.totalorder %s223, %s226
      %p232 = scmp.eq.s32.totalorder %s19, 0
      %p233 = por %p231, %p232
      %p234 = scmp.ne.s32.totalorder %s223, %s226
      %p235 = scmp.eq.s32.totalorder %s24, 2
      %p236 = por %p234, %p235
      %p237 = scmp.ne.s32.totalorder %s226, %s227
      %p238 = scmp.eq.s32.totalorder %s24, 0
      %p239 = por %p237, %p238
      %p240 = scmp.ne.s32.totalorder %s226, %s227
      %p241 = scmp.eq.s32.totalorder %s25, 2
      %p242 = por %p240, %p241
      %p244 = scmp.ne.s32.totalorder %s227, %s243
      %p245 = scmp.eq.s32.totalorder %s25, 0
      %p246 = por %p244, %p245
      %p247 = scmp.le.s32.totalorder 1, %s19
      %p248 = scmp.lt.s32.totalorder %s19, 4
      %p249 = pnand %p247, %p248
      %p250 = pneg %p249
      // Predicated region
      $region9: #{tpu_custom_call.1} parent=5 // pred_check
        _
      $region10: #{tpu_custom_call.1} parent=5 // pred_check_branch
        %252 = sbr.rel (%p249) target = $region12
      $region11: #{tpu_custom_call.1} parent=5 // pred_region
        %s253 = ssub.s32 %s19, 1
        // Predicated region
        $region13: #{tpu_custom_call.1} parent=11 // pred_check
          %p254 = pneg %p66
        $region14: #{tpu_custom_call.1} parent=11 // pred_check_branch
          %256 = sbr.rel (%p254) target = $region16
        $region15: #{tpu_custom_call.1} parent=11 // pred_region
          _
        $region16: #{tpu_custom_call.1} parent=11 // pred_fallthru
          _
        // Predicated region
        $region17: #{tpu_custom_call.1} parent=11 // pred_check
          %p257 = pneg %p87
        $region18: #{tpu_custom_call.1} parent=11 // pred_check_branch
          %259 = sbr.rel (%p257) target = $region20
        $region19: #{tpu_custom_call.1} parent=11 // pred_region
          _
        $region20: #{tpu_custom_call.1} parent=11 // pred_fallthru
          _
        // Predicated region
        $region21: #{tpu_custom_call.1} parent=11 // pred_check
          %p260 = pneg %p108
        $region22: #{tpu_custom_call.1} parent=11 // pred_check_branch
          %262 = sbr.rel (%p260) target = $region24
        $region23: #{tpu_custom_call.1} parent=11 // pred_region
          %264 = vsyncadd [#allocation4], 0
          %s265 = sshll.u32 %s3, 4
          %s266 = int_to_ptr.hbm [resolvable:$true] %s265
          %s267 = sshll.u32 [#allocation3], 4
          %s268 = int_to_ptr.vmem [resolvable:$true] %s267
          %273 = dma.hbm_to_vmem [thread:$0]  %s266, 4096, %s268, [#allocation4], 128, 128, 8
        $region24: #{tpu_custom_call.1} parent=11 // pred_fallthru
          _
        // Predicated region
        $region25: #{tpu_custom_call.1} parent=11 // pred_check
          %p274 = pneg %p129
        $region26: #{tpu_custom_call.1} parent=11 // pred_check_branch
          %276 = sbr.rel (%p274) target = $region28
        $region27: #{tpu_custom_call.1} parent=11 // pred_region
          _
        $region28: #{tpu_custom_call.1} parent=11 // pred_fallthru
          _
        // Predicated region
        $region29: #{tpu_custom_call.1} parent=11 // pred_check
          %p277 = pneg %p150
        $region30: #{tpu_custom_call.1} parent=11 // pred_check_branch
          %279 = sbr.rel (%p277) target = $region32
        $region31: #{tpu_custom_call.1} parent=11 // pred_region
          %281 = vsyncadd [#allocation6], 0
          %s282 = sshll.u32 %s5, 4
          %s283 = int_to_ptr.hbm [resolvable:$true] %s282
          %s284 = sshll.u32 [#allocation5], 4
          %s285 = int_to_ptr.vmem [resolvable:$true] %s284
          %290 = dma.hbm_to_vmem [thread:$0]  %s283, 2048, %s285, [#allocation6], 64, 64, 4
        $region32: #{tpu_custom_call.1} parent=11 // pred_fallthru
          _
        // Predicated region
        $region33: #{tpu_custom_call.1} parent=11 // pred_check
          %p291 = pneg %p171
        $region34: #{tpu_custom_call.1} parent=11 // pred_check_branch
          %293 = sbr.rel (%p291) target = $region36
        $region35: #{tpu_custom_call.1} parent=11 // pred_region
          _
        $region36: #{tpu_custom_call.1} parent=11 // pred_fallthru
          _
        // Predicated region
        $region37: #{tpu_custom_call.1} parent=11 // pred_check
          %p294 = pneg %p192
        $region38: #{tpu_custom_call.1} parent=11 // pred_check_branch
          %296 = sbr.rel (%p294) target = $region40
        $region39: #{tpu_custom_call.1} parent=11 // pred_region
          _
        $region40: #{tpu_custom_call.1} parent=11 // pred_fallthru
          _
        // Predicated region
        $region41: #{tpu_custom_call.1} parent=11 // pred_check
          %p297 = pneg %p213
        $region42: #{tpu_custom_call.1} parent=11 // pred_check_branch
          %299 = sbr.rel (%p297) target = $region44
        $region43: #{tpu_custom_call.1} parent=11 // pred_region
          _
        $region44: #{tpu_custom_call.1} parent=11 // pred_fallthru
          _
      $region12: #{tpu_custom_call.1} parent=5 // pred_fallthru
        _
      %p300 = scmp.lt.s32.totalorder %s19, 3
      // Predicated region
      $region45: #{tpu_custom_call.1} parent=5 // pred_check
        %p301 = pneg %p300
      $region46: #{tpu_custom_call.1} parent=5 // pred_check_branch
        %303 = sbr.rel (%p301) target = $region48
      $region47: #{tpu_custom_call.1} parent=5 // pred_region
        // Predicated region
        $region49: #{tpu_custom_call.1} parent=47 // pred_check
          %p304 = pneg %p39
        $region50: #{tpu_custom_call.1} parent=47 // pred_check_branch
          %306 = sbr.rel (%p304) target = $region52
        $region51: #{tpu_custom_call.1} parent=47 // pred_region
          %s307 = smul.u32 2, %s19
          %p308 = scmp.lt.s32.totalorder %s307, 5
          %s309 = scalar_select %p308, %s307, 5
          %s310 = smul.addr %s309, 8
          %s311 = scalar_lea.vmem %s0, %s310
          %s312 = smul.u32 2, %s19
        $region52: #{tpu_custom_call.1} parent=47 // pred_fallthru
          _
      $region48: #{tpu_custom_call.1} parent=5 // pred_fallthru
        _
      %p313 = scmp.le.s32.totalorder 1, %s19
      %p314 = scmp.lt.s32.totalorder %s19, 4
      %p315 = pnand %p313, %p314
      %p316 = pneg %p315
      // Predicated region
      $region53: #{tpu_custom_call.1} parent=5 // pred_check
        _
      $region54: #{tpu_custom_call.1} parent=5 // pred_check_branch
        %318 = sbr.rel (%p315) target = $region56
      $region55: #{tpu_custom_call.1} parent=5 // pred_region
        %s319 = ssub.s32 %s19, 1
        // Predicated region
        $region57: #{tpu_custom_call.1} parent=55 // pred_check
          %p320 = pneg %p108
        $region58: #{tpu_custom_call.1} parent=55 // pred_check_branch
          %322 = sbr.rel (%p320) target = $region60
        $region59: #{tpu_custom_call.1} parent=55 // pred_region
          %324 = dma.done [#allocation4], 4096
        $region60: #{tpu_custom_call.1} parent=55 // pred_fallthru
          _
        // Predicated region
        $region61: #{tpu_custom_call.1} parent=55 // pred_check
          %p325 = pneg %p150
        $region62: #{tpu_custom_call.1} parent=55 // pred_check_branch
          %327 = sbr.rel (%p325) target = $region64
        $region63: #{tpu_custom_call.1} parent=55 // pred_region
          %329 = dma.done [#allocation6], 2048
        $region64: #{tpu_custom_call.1} parent=55 // pred_fallthru
          _
        %s330 = smul.u32 2, %s24
        %p331 = scmp.lt.s32.totalorder %s330, 5
        %s332 = scalar_select %p331, %s330, 5
        %s333 = smul.addr %s332, 8
        %s334 = scalar_lea.vmem %s0, %s333
        %p335 = pneg %p45
        %p336 = pneg %p42
        %p337 = pneg %p66
        %p338 = pneg %p63
        %p339 = pneg %p87
        %p340 = pneg %p84
        %p341 = pneg %p108
        %p342 = pneg %p105
        %p343 = pneg %p129
        %p344 = pneg %p126
        %p345 = pneg %p150
        %p346 = pneg %p147
        %p347 = pneg %p171
        %p348 = pneg %p168
        %p349 = pneg %p192
        %p350 = pneg %p189
        %p351 = pneg %p213
        %p352 = pneg %p210
        %p353 = pneg %p239
        %p354 = pneg %p236
        %s355 = smul.u32 2, %s24
        %p356 = scmp.lt.s32.totalorder %s355, 5
        %s357 = scalar_select %p356, %s355, 5
        %s358 = smul.addr %s357, 8
        %s359 = scalar_lea.vmem %s9, %s358
        %s360 = smul.u32 2, %s24
        %p361 = scmp.lt.s32.totalorder %s360, 5
        %s362 = scalar_select %p361, %s360, 5
        %s363 = smul.addr %s362, 8
        %s364 = scalar_lea.vmem %s0, %s363
        %s365 = smul.u32 2, %s24
        %s366 = smul.u32 2, %s24
        %p367 = scmp.lt.s32.totalorder %s366, 5
        %s368 = scalar_select %p367, %s366, 5
        %s369 = smul.addr %s368, 8
        %s370 = scalar_lea.vmem %s9, %s369
        %s371 = smul.u32 2, %s24
        %v373 = vld [vmem:[%s364] sm:$0xff]
        %v374 = vld [vmem:[%s364 + $0x8] sm:$0xff]
        %v375 = vpack.c.bf16 %v374, %v373
        %v376 = vld [vmem:[%s1] sm:$0xff]
        %v377 = vld [vmem:[%s1 + $0x8] sm:$0xff]
        %v378 = vld [vmem:[%s1 + $0x10] sm:$0xff]
        %v379 = vld [vmem:[%s1 + $0x18] sm:$0xff]
        %v380 = vld [vmem:[%s2] sm:$0x3]
        %v382 = vperm.slane %v380, 0
        %v383 = vperm.slane %v380, 1
        %v390 = vunpack.c.l.b16 %v376
        %v391 = vunpack.c.h.b16 %v376
        %v392 = vunpack.c.l.b16 %v377
        %v393 = vunpack.c.h.b16 %v377
        %v394 = vunpack.c.l.b16 %v378
        %v395 = vunpack.c.h.b16 %v378
        %v396 = vunpack.c.l.b16 %v379
        %v397 = vunpack.c.h.b16 %v379
        %v398 = vpack.c.b16 %v392, %v390
        %v399 = vpack.c.b16 %v393, %v391
        %v400 = vpack.c.b16 %v396, %v394
        %v401 = vpack.c.b16 %v397, %v395
        %vm406 = vcmask 261120
        %v408 = vsel %vm406, %v375, 0
        %410 = vmatpush.bf16.msra.mxu0 0
        %411 = vmatpush.bf16.msra.mxu0 0
        %412 = vmatpush.bf16.msra.mxu0 0
        %413 = vmatpush.bf16.msra.mxu0 0
        %414 = vmatpush.bf16.msra.mxu0 0
        %415 = vmatpush.bf16.msra.mxu0 0
        %416 = vmatpush.bf16.msra.mxu0 %v400
        %417 = vmatpush.bf16.msra.mxu0 %v398
        %418 = vmatmul.bf16.gmra.mxu0 %v408
        %v419 = vpop.f32.mrf.mxu0
        %v420 = vadd.f32 %v382, %v419
        %v421 = vpop.f32.mrf.mxu0
        %v422 = vadd.f32 %v382, %v421
        %423 = vdwg.mxu0
        %424 = vmatpush.bf16.msra.mxu0 0
        %425 = vmatpush.bf16.msra.mxu0 0
        %426 = vmatpush.bf16.msra.mxu0 0
        %427 = vmatpush.bf16.msra.mxu0 0
        %428 = vmatpush.bf16.msra.mxu0 0
        %429 = vmatpush.bf16.msra.mxu0 0
        %430 = vmatpush.bf16.msra.mxu0 %v401
        %431 = vmatpush.bf16.msra.mxu0 %v399
        %432 = vmatmul.bf16.gmra.mxu0 %v408
        %v433 = vpop.f32.mrf.mxu0
        %v434 = vadd.f32 %v383, %v433
        %v435 = vpop.f32.mrf.mxu0
        %v436 = vadd.f32 %v383, %v435
        %437 = vdwg.mxu0
        %vm438 = vcmp.gt.f32.partialorder %v420, 0.0
        %vm439 = vcmp.gt.f32.partialorder %v434, 0.0
        %vm440 = vcmp.gt.f32.partialorder %v422, 0.0
        %vm441 = vcmp.gt.f32.partialorder %v436, 0.0
        %v442 = vmul.f32 %v420, 0.1
        %v443 = vmul.f32 %v434, 0.1
        %v444 = vmul.f32 %v422, 0.1
        %v445 = vmul.f32 %v436, 0.1
        %v446 = vsel %vm438, %v420, %v442
        %v447 = vsel %vm439, %v434, %v443
        %v448 = vsel %vm440, %v422, %v444
        %v449 = vsel %vm441, %v436, %v445
        %v450 = vpack.c.bf16 %v448, %v446
        %v451 = vpack.c.bf16 %v449, %v447
        %v452 = vld [vmem:[#allocation3] sm:$0xff]
        %v453 = vld [vmem:[#allocation3 + $0x8] sm:$0xff]
        %v454 = vld [vmem:[#allocation3 + $0x10] sm:$0xff]
        %v455 = vld [vmem:[#allocation3 + $0x18] sm:$0xff]
        %v456 = vld [vmem:[#allocation3 + $0x20] sm:$0xff]
        %v457 = vld [vmem:[#allocation3 + $0x28] sm:$0xff]
        %v458 = vld [vmem:[#allocation3 + $0x30] sm:$0xff]
        %v459 = vld [vmem:[#allocation3 + $0x38] sm:$0xff]
        %v460 = vld [vmem:[#allocation3 + $0x40] sm:$0xff]
        %v461 = vld [vmem:[#allocation3 + $0x48] sm:$0xff]
        %v462 = vld [vmem:[#allocation3 + $0x50] sm:$0xff]
        %v463 = vld [vmem:[#allocation3 + $0x58] sm:$0xff]
        %v464 = vld [vmem:[#allocation3 + $0x60] sm:$0xff]
        %v465 = vld [vmem:[#allocation3 + $0x68] sm:$0xff]
        %v466 = vld [vmem:[#allocation3 + $0x70] sm:$0xff]
        %v467 = vld [vmem:[#allocation3 + $0x78] sm:$0xff]
        %v468 = vld [vmem:[#allocation3 + $0x80] sm:$0xff]
        %v469 = vld [vmem:[#allocation3 + $0x88] sm:$0xff]
        %v470 = vld [vmem:[#allocation3 + $0x90] sm:$0xff]
        %v471 = vld [vmem:[#allocation3 + $0x98] sm:$0xff]
        %v472 = vld [vmem:[#allocation3 + $0xa0] sm:$0xff]
        %v473 = vld [vmem:[#allocation3 + $0xa8] sm:$0xff]
        %v474 = vld [vmem:[#allocation3 + $0xb0] sm:$0xff]
        %v475 = vld [vmem:[#allocation3 + $0xb8] sm:$0xff]
        %v476 = vld [vmem:[#allocation3 + $0xc0] sm:$0xff]
        %v477 = vld [vmem:[#allocation3 + $0xc8] sm:$0xff]
        %v478 = vld [vmem:[#allocation3 + $0xd0] sm:$0xff]
        %v479 = vld [vmem:[#allocation3 + $0xd8] sm:$0xff]
        %v480 = vld [vmem:[#allocation3 + $0xe0] sm:$0xff]
        %v481 = vld [vmem:[#allocation3 + $0xe8] sm:$0xff]
        %v482 = vld [vmem:[#allocation3 + $0xf0] sm:$0xff]
        %v483 = vld [vmem:[#allocation3 + $0xf8] sm:$0xff]
        %v484 = vld [vmem:[%s4] sm:$0x3]
        %v486 = vperm.slane %v484, 0
        %v487 = vperm.slane %v484, 1
        %v522 = vunpack.c.l.b16 %v452
        %v523 = vunpack.c.h.b16 %v452
        %v524 = vunpack.c.l.b16 %v453
        %v525 = vunpack.c.h.b16 %v453
        %v526 = vunpack.c.l.b16 %v454
        %v527 = vunpack.c.h.b16 %v454
        %v528 = vunpack.c.l.b16 %v455
        %v529 = vunpack.c.h.b16 %v455
        %v530 = vunpack.c.l.b16 %v456
        %v531 = vunpack.c.h.b16 %v456
        %v532 = vunpack.c.l.b16 %v457
        %v533 = vunpack.c.h.b16 %v457
        %v534 = vunpack.c.l.b16 %v458
        %v535 = vunpack.c.h.b16 %v458
        %v536 = vunpack.c.l.b16 %v459
        %v537 = vunpack.c.h.b16 %v459
        %v538 = vunpack.c.l.b16 %v460
        %v539 = vunpack.c.h.b16 %v460
        %v540 = vunpack.c.l.b16 %v461
        %v541 = vunpack.c.h.b16 %v461
        %v542 = vunpack.c.l.b16 %v462
        %v543 = vunpack.c.h.b16 %v462
        %v544 = vunpack.c.l.b16 %v463
        %v545 = vunpack.c.h.b16 %v463
        %v546 = vunpack.c.l.b16 %v464
        %v547 = vunpack.c.h.b16 %v464
        %v548 = vunpack.c.l.b16 %v465
        %v549 = vunpack.c.h.b16 %v465
        %v550 = vunpack.c.l.b16 %v466
        %v551 = vunpack.c.h.b16 %v466
        %v552 = vunpack.c.l.b16 %v467
        %v553 = vunpack.c.h.b16 %v467
        %v554 = vunpack.c.l.b16 %v468
        %v555 = vunpack.c.h.b16 %v468
        %v556 = vunpack.c.l.b16 %v469
        %v557 = vunpack.c.h.b16 %v469
        %v558 = vunpack.c.l.b16 %v470
        %v559 = vunpack.c.h.b16 %v470
        %v560 = vunpack.c.l.b16 %v471
        %v561 = vunpack.c.h.b16 %v471
        %v562 = vunpack.c.l.b16 %v472
        %v563 = vunpack.c.h.b16 %v472
        %v564 = vunpack.c.l.b16 %v473
        %v565 = vunpack.c.h.b16 %v473
        %v566 = vunpack.c.l.b16 %v474
        %v567 = vunpack.c.h.b16 %v474
        %v568 = vunpack.c.l.b16 %v475
        %v569 = vunpack.c.h.b16 %v475
        %v570 = vunpack.c.l.b16 %v476
        %v571 = vunpack.c.h.b16 %v476
        %v572 = vunpack.c.l.b16 %v477
        %v573 = vunpack.c.h.b16 %v477
        %v574 = vunpack.c.l.b16 %v478
        %v575 = vunpack.c.h.b16 %v478
        %v576 = vunpack.c.l.b16 %v479
        %v577 = vunpack.c.h.b16 %v479
        %v578 = vunpack.c.l.b16 %v480
        %v579 = vunpack.c.h.b16 %v480
        %v580 = vunpack.c.l.b16 %v481
        %v581 = vunpack.c.h.b16 %v481
        %v582 = vunpack.c.l.b16 %v482
        %v583 = vunpack.c.h.b16 %v482
        %v584 = vunpack.c.l.b16 %v483
        %v585 = vunpack.c.h.b16 %v483
        %v586 = vpack.c.b16 %v524, %v522
        %v587 = vpack.c.b16 %v525, %v523
        %v588 = vpack.c.b16 %v528, %v526
        %v589 = vpack.c.b16 %v529, %v527
        %v590 = vpack.c.b16 %v532, %v530
        %v591 = vpack.c.b16 %v533, %v531
        %v592 = vpack.c.b16 %v536, %v534
        %v593 = vpack.c.b16 %v537, %v535
        %v594 = vpack.c.b16 %v540, %v538
        %v595 = vpack.c.b16 %v541, %v539
        %v596 = vpack.c.b16 %v544, %v542
        %v597 = vpack.c.b16 %v545, %v543
        %v598 = vpack.c.b16 %v548, %v546
        %v599 = vpack.c.b16 %v549, %v547
        %v600 = vpack.c.b16 %v552, %v550
        %v601 = vpack.c.b16 %v553, %v551
        %v602 = vpack.c.b16 %v556, %v554
        %v603 = vpack.c.b16 %v557, %v555
        %v604 = vpack.c.b16 %v560, %v558
        %v605 = vpack.c.b16 %v561, %v559
        %v606 = vpack.c.b16 %v564, %v562
        %v607 = vpack.c.b16 %v565, %v563
        %v608 = vpack.c.b16 %v568, %v566
        %v609 = vpack.c.b16 %v569, %v567
        %v610 = vpack.c.b16 %v572, %v570
        %v611 = vpack.c.b16 %v573, %v571
        %v612 = vpack.c.b16 %v576, %v574
        %v613 = vpack.c.b16 %v577, %v575
        %v614 = vpack.c.b16 %v580, %v578
        %v615 = vpack.c.b16 %v581, %v579
        %v616 = vpack.c.b16 %v584, %v582
        %v617 = vpack.c.b16 %v585, %v583
        %650 = vmatpush.bf16.msra.mxu0 %v600
        %651 = vmatpush.bf16.msra.mxu0 %v598
        %652 = vmatpush.bf16.msra.mxu0 %v596
        %653 = vmatpush.bf16.msra.mxu0 %v594
        %654 = vmatpush.bf16.msra.mxu0 %v592
        %655 = vmatpush.bf16.msra.mxu0 %v590
        %656 = vmatpush.bf16.msra.mxu0 %v588
        %657 = vmatpush.bf16.msra.mxu0 %v586
        %658 = vmatmul.bf16.gmra.mxu0 %v450
        %v659 = vpop.f32.mrf.mxu0
        %v660 = vadd.f32 %v486, %v659
        %v661 = vpop.f32.mrf.mxu0
        %v662 = vadd.f32 %v486, %v661
        %663 = vdwg.mxu0
        %664 = vmatpush.bf16.msra.mxu0 %v616
        %665 = vmatpush.bf16.msra.mxu0 %v614
        %666 = vmatpush.bf16.msra.mxu0 %v612
        %667 = vmatpush.bf16.msra.mxu0 %v610
        %668 = vmatpush.bf16.msra.mxu0 %v608
        %669 = vmatpush.bf16.msra.mxu0 %v606
        %670 = vmatpush.bf16.msra.mxu0 %v604
        %671 = vmatpush.bf16.msra.mxu0 %v602
        %672 = vmatmul.bf16.gmra.mxu0 %v451
        %v673 = vpop.f32.mrf.mxu0
        %v674 = vadd.f32 %v660, %v673
        %v675 = vpop.f32.mrf.mxu0
        %v676 = vadd.f32 %v662, %v675
        %677 = vdwg.mxu0
        %678 = vmatpush.bf16.msra.mxu0 %v601
        %679 = vmatpush.bf16.msra.mxu0 %v599
        %680 = vmatpush.bf16.msra.mxu0 %v597
        %681 = vmatpush.bf16.msra.mxu0 %v595
        %682 = vmatpush.bf16.msra.mxu0 %v593
        %683 = vmatpush.bf16.msra.mxu0 %v591
        %684 = vmatpush.bf16.msra.mxu0 %v589
        %685 = vmatpush.bf16.msra.mxu0 %v587
        %686 = vmatmul.bf16.gmra.mxu0 %v450
        %v687 = vpop.f32.mrf.mxu0
        %v688 = vadd.f32 %v487, %v687
        %v689 = vpop.f32.mrf.mxu0
        %v690 = vadd.f32 %v487, %v689
        %691 = vdwg.mxu0
        %692 = vmatpush.bf16.msra.mxu0 %v617
        %693 = vmatpush.bf16.msra.mxu0 %v615
        %694 = vmatpush.bf16.msra.mxu0 %v613
        %695 = vmatpush.bf16.msra.mxu0 %v611
        %696 = vmatpush.bf16.msra.mxu0 %v609
        %697 = vmatpush.bf16.msra.mxu0 %v607
        %698 = vmatpush.bf16.msra.mxu0 %v605
        %699 = vmatpush.bf16.msra.mxu0 %v603
        %700 = vmatmul.bf16.gmra.mxu0 %v451
        %v701 = vpop.f32.mrf.mxu0
        %v702 = vadd.f32 %v688, %v701
        %v703 = vpop.f32.mrf.mxu0
        %v704 = vadd.f32 %v690, %v703
        %705 = vdwg.mxu0
        %vm706 = vcmp.gt.f32.partialorder %v674, 0.0
        %vm707 = vcmp.gt.f32.partialorder %v702, 0.0
        %vm708 = vcmp.gt.f32.partialorder %v676, 0.0
        %vm709 = vcmp.gt.f32.partialorder %v704, 0.0
        %v710 = vmul.f32 %v674, 0.1
        %v711 = vmul.f32 %v702, 0.1
        %v712 = vmul.f32 %v676, 0.1
        %v713 = vmul.f32 %v704, 0.1
        %v714 = vsel %vm706, %v674, %v710
        %v715 = vsel %vm707, %v702, %v711
        %v716 = vsel %vm708, %v676, %v712
        %v717 = vsel %vm709, %v704, %v713
        %v718 = vpack.c.bf16 %v716, %v714
        %v719 = vpack.c.bf16 %v717, %v715
        %v720 = vld [vmem:[#allocation5] sm:$0xf]
        %v721 = vld [vmem:[#allocation5 + $0x4] sm:$0xf]
        %v722 = vld [vmem:[#allocation5 + $0x8] sm:$0xf]
        %v723 = vld [vmem:[#allocation5 + $0xc] sm:$0xf]
        %v724 = vld [vmem:[#allocation5 + $0x10] sm:$0xf]
        %v725 = vld [vmem:[#allocation5 + $0x14] sm:$0xf]
        %v726 = vld [vmem:[#allocation5 + $0x18] sm:$0xf]
        %v727 = vld [vmem:[#allocation5 + $0x1c] sm:$0xf]
        %v728 = vld [vmem:[#allocation5 + $0x20] sm:$0xf]
        %v729 = vld [vmem:[#allocation5 + $0x24] sm:$0xf]
        %v730 = vld [vmem:[#allocation5 + $0x28] sm:$0xf]
        %v731 = vld [vmem:[#allocation5 + $0x2c] sm:$0xf]
        %v732 = vld [vmem:[#allocation5 + $0x30] sm:$0xf]
        %v733 = vld [vmem:[#allocation5 + $0x34] sm:$0xf]
        %v734 = vld [vmem:[#allocation5 + $0x38] sm:$0xf]
        %v735 = vld [vmem:[#allocation5 + $0x3c] sm:$0xf]
        %v736 = vld [vmem:[#allocation5 + $0x40] sm:$0xf]
        %v737 = vld [vmem:[#allocation5 + $0x44] sm:$0xf]
        %v738 = vld [vmem:[#allocation5 + $0x48] sm:$0xf]
        %v739 = vld [vmem:[#allocation5 + $0x4c] sm:$0xf]
        %v740 = vld [vmem:[#allocation5 + $0x50] sm:$0xf]
        %v741 = vld [vmem:[#allocation5 + $0x54] sm:$0xf]
        %v742 = vld [vmem:[#allocation5 + $0x58] sm:$0xf]
        %v743 = vld [vmem:[#allocation5 + $0x5c] sm:$0xf]
        %v744 = vld [vmem:[#allocation5 + $0x60] sm:$0xf]
        %v745 = vld [vmem:[#allocation5 + $0x64] sm:$0xf]
        %v746 = vld [vmem:[#allocation5 + $0x68] sm:$0xf]
        %v747 = vld [vmem:[#allocation5 + $0x6c] sm:$0xf]
        %v748 = vld [vmem:[#allocation5 + $0x70] sm:$0xf]
        %v749 = vld [vmem:[#allocation5 + $0x74] sm:$0xf]
        %v750 = vld [vmem:[#allocation5 + $0x78] sm:$0xf]
        %v751 = vld [vmem:[#allocation5 + $0x7c] sm:$0xf]
        %v752 = vld [vmem:[%s6] sm:$0x1]
        %v754 = vperm.slane %v752, 0
        %v788 = vunpack.c.l.b16 %v720
        %v789 = vunpack.c.l.b16 %v721
        %v790 = vunpack.c.l.b16 %v722
        %v791 = vunpack.c.l.b16 %v723
        %v792 = vunpack.c.l.b16 %v724
        %v793 = vunpack.c.l.b16 %v725
        %v794 = vunpack.c.l.b16 %v726
        %v795 = vunpack.c.l.b16 %v727
        %v796 = vunpack.c.l.b16 %v728
        %v797 = vunpack.c.l.b16 %v729
        %v798 = vunpack.c.l.b16 %v730
        %v799 = vunpack.c.l.b16 %v731
        %v800 = vunpack.c.l.b16 %v732
        %v801 = vunpack.c.l.b16 %v733
        %v802 = vunpack.c.l.b16 %v734
        %v803 = vunpack.c.l.b16 %v735
        %v804 = vunpack.c.l.b16 %v736
        %v805 = vunpack.c.l.b16 %v737
        %v806 = vunpack.c.l.b16 %v738
        %v807 = vunpack.c.l.b16 %v739
        %v808 = vunpack.c.l.b16 %v740
        %v809 = vunpack.c.l.b16 %v741
        %v810 = vunpack.c.l.b16 %v742
        %v811 = vunpack.c.l.b16 %v743
        %v812 = vunpack.c.l.b16 %v744
        %v813 = vunpack.c.l.b16 %v745
        %v814 = vunpack.c.l.b16 %v746
        %v815 = vunpack.c.l.b16 %v747
        %v816 = vunpack.c.l.b16 %v748
        %v817 = vunpack.c.l.b16 %v749
        %v818 = vunpack.c.l.b16 %v750
        %v819 = vunpack.c.l.b16 %v751
        %v820 = vpack.c.b16 %v789, %v788
        %v821 = vpack.c.b16 %v791, %v790
        %v822 = vpack.c.b16 %v793, %v792
        %v823 = vpack.c.b16 %v795, %v794
        %v824 = vpack.c.b16 %v797, %v796
        %v825 = vpack.c.b16 %v799, %v798
        %v826 = vpack.c.b16 %v801, %v800
        %v827 = vpack.c.b16 %v803, %v802
        %v828 = vpack.c.b16 %v805, %v804
        %v829 = vpack.c.b16 %v807, %v806
        %v830 = vpack.c.b16 %v809, %v808
        %v831 = vpack.c.b16 %v811, %v810
        %v832 = vpack.c.b16 %v813, %v812
        %v833 = vpack.c.b16 %v815, %v814
        %v834 = vpack.c.b16 %v817, %v816
        %v835 = vpack.c.b16 %v819, %v818
        %852 = vmatpush.bf16.msra.mxu0 %v827
        %853 = vmatpush.bf16.msra.mxu0 %v826
        %854 = vmatpush.bf16.msra.mxu0 %v825
        %855 = vmatpush.bf16.msra.mxu0 %v824
        %856 = vmatpush.bf16.msra.mxu0 %v823
        %857 = vmatpush.bf16.msra.mxu0 %v822
        %858 = vmatpush.bf16.msra.mxu0 %v821
        %859 = vmatpush.bf16.msra.mxu0 %v820
        %860 = vmatmul.bf16.gmra.mxu0 %v718
        %v861 = vpop.f32.mrf.mxu0
        %v862 = vadd.f32 %v754, %v861
        %v863 = vpop.f32.mrf.mxu0
        %v864 = vadd.f32 %v754, %v863
        %865 = vdwg.mxu0
        %866 = vmatpush.bf16.msra.mxu0 %v835
        %867 = vmatpush.bf16.msra.mxu0 %v834
        %868 = vmatpush.bf16.msra.mxu0 %v833
        %869 = vmatpush.bf16.msra.mxu0 %v832
        %870 = vmatpush.bf16.msra.mxu0 %v831
        %871 = vmatpush.bf16.msra.mxu0 %v830
        %872 = vmatpush.bf16.msra.mxu0 %v829
        %873 = vmatpush.bf16.msra.mxu0 %v828
        %874 = vmatmul.bf16.gmra.mxu0 %v719
        %v875 = vpop.f32.mrf.mxu0
        %v876 = vadd.f32 %v862, %v875
        %v877 = vpop.f32.mrf.mxu0
        %v878 = vadd.f32 %v864, %v877
        %879 = vdwg.mxu0
        %vm880 = vcmp.gt.f32.partialorder %v876, 0.0
        %vm881 = vcmp.gt.f32.partialorder %v878, 0.0
        %v882 = vmul.f32 %v876, 0.1
        %v883 = vmul.f32 %v878, 0.1
        %v884 = vsel %vm880, %v876, %v882
        %v885 = vsel %vm881, %v878, %v883
        %v886 = vld [vmem:[%s7] sm:$0x1]
        %v888 = vperm.slane %v886, 0
        %v890 = vmul.f32 %v884, %v888
        %v891 = vmul.f32 %v885, %v888
        %892 = vadd.xlane.f32.xlu0 %v890
        %v893 = vpop.xlane.xlu0 %892
        %894 = vadd.xlane.f32.xlu0 %v891
        %v895 = vpop.xlane.xlu0 %894
        %v896 = vld [vmem:[#allocation2] sm:$0x1]
        %v898 = vperm.slane %v896, 0
        %v900 = vadd.f32 %v893, %v898
        %v901 = vadd.f32 %v895, %v898
        %vm902 = vcmask 7168
        %903 = vst.msk [vmem:[%s370] sm:$0xff] %vm902, %v900
        %904 = vst.msk [vmem:[%s370 + $0x8] sm:$0xff] %vm902, %v901
        %s905 = smul.u32 2, %s24
        %p906 = scmp.lt.s32.totalorder %s905, 5
        %s907 = scalar_select %p906, %s905, 5
        %s908 = smul.addr %s907, 8
        %s909 = scalar_lea.vmem %s9, %s908
        // Predicated region
        $region65: #{tpu_custom_call.1} parent=55 // pred_check
          %p910 = pneg %p236
        $region66: #{tpu_custom_call.1} parent=55 // pred_check_branch
          %912 = sbr.rel (%p910) target = $region68
        $region67: #{tpu_custom_call.1} parent=55 // pred_region
          %s913 = smul.u32 2, %s24
        $region68: #{tpu_custom_call.1} parent=55 // pred_fallthru
          _
      $region56: #{tpu_custom_call.1} parent=5 // pred_fallthru
        _
      %p914 = scmp.le.s32.totalorder 2, %s19
      // Predicated region
      $region69: #{tpu_custom_call.1} parent=5 // pred_check
        %p915 = pneg %p914
      $region70: #{tpu_custom_call.1} parent=5 // pred_check_branch
        %917 = sbr.rel (%p915) target = $region72
      $region71: #{tpu_custom_call.1} parent=5 // pred_region
        %s918 = ssub.s32 %s19, 2
        // Predicated region
        $region73: #{tpu_custom_call.1} parent=71 // pred_check
          %p919 = pneg %p242
        $region74: #{tpu_custom_call.1} parent=71 // pred_check_branch
          %921 = sbr.rel (%p919) target = $region76
        $region75: #{tpu_custom_call.1} parent=71 // pred_region
          %s922 = smul.u32 2, %s25
          %p923 = scmp.lt.s32.totalorder %s922, 5
          %s924 = scalar_select %p923, %s922, 5
          %s925 = smul.addr %s924, 8
          %s926 = scalar_lea.vmem %s9, %s925
        $region76: #{tpu_custom_call.1} parent=71 // pred_fallthru
          _
      $region72: #{tpu_custom_call.1} parent=5 // pred_fallthru
        _
    $region6: #{tpu_custom_call.1} parent=1 // loop_footer
      %s23 = sadd.s32 1, %s19
    $region7: #{tpu_custom_call.1} parent=1 // loop_footer_branch
      %18 = sbr.rel target = $region3
    $region8: #{tpu_custom_call.1} parent=1 // loop_exit
      _
    %927 = vsyncpa [#allocation4], 1
    %s928 = scalar_lea.sflag [#allocation4], 1
    %929 = vsyncpa %s928, 1
    %930 = vsyncpa [#allocation6], 1

</llo_original>
